<compile_context>
chip_gen: v7x
topology: tpu7x:2x2x1
jax: 0.10.0
libtpu: 0.0.40
codegen_flags: <defaults>
</compile_context>

<pallas_src>
import numpy as np
import jax
import jax.numpy as jnp
from jax.experimental import pallas as pl
from jax.experimental.pallas import tpu as pltpu

_SUBLANE = 8
_LANE = 128

# Below this many bytes the pallas_call dispatch (+ ~0.35 us per grid step)
# dwarfs the nanosecond-scale copy, so Pallas is bypassed (forward is identity).
_BYPASS_BYTES = 256 * 1024

# Tile sizing: target ~4 MiB lane-dense tiles (2-8 MiB range).  With in + out
# each double-buffered the live footprint is ~4x tile bytes, so a 24 MiB live
# budget (tile <= 6 MiB) leaves headroom even on v7x's 64 MiB physical VMEM.
_TILE_TARGET_BYTES = 4 * 1024 * 1024
_VMEM_LIVE_BUDGET_BYTES = 24 * 1024 * 1024
_VMEM_LIMIT_BYTES = 48 * 1024 * 1024
# Prefer at least this many grid steps on large arrays so dimension_semantics
# ("parallel",) can distribute tiles over v7x's two TensorCores.
_MIN_GRID_STEPS = 8


def _copy_kernel(z_ref, o_ref):
    # forward(): return self.z  -> straight vreg load/store through VMEM.
    o_ref[...] = z_ref[...]


def _pick_lane_dense_shape(n_elems: int):
    """Return (rows, cols) with cols a multiple of 128 dividing n_elems.

    Picks the largest cols <= 16384 (128 lanes * up to 128 sublane-chunks) so
    the kernel's last dim is always lane-dense.  Returns None if 128 does not
    divide n_elems.
    """
    if n_elems <= 0 or n_elems % _LANE != 0:
        return None
    for m in range(128, 0, -1):
        cols = _LANE * m
        if n_elems % cols == 0:
            return (n_elems // cols, cols)
    return None  # unreachable (m == 1 always divides when n % 128 == 0)


def _tile_rows_for(rows: int, cols: int, itemsize: int) -> int:
    """Row count per tile: ~4 MiB tiles, <= 6 MiB (24 MiB / 4 live), enough
    grid steps for two TensorCores, multiple of 8 (or full rows)."""
    row_bytes = cols * itemsize
    tr = max(1, _TILE_TARGET_BYTES // row_bytes)
    tr = min(tr, max(1, _VMEM_LIVE_BUDGET_BYTES // (4 * row_bytes)))
    tr = max(_SUBLANE, (tr // _SUBLANE) * _SUBLANE)
    # For big arrays, shrink tiles so the grid has >= _MIN_GRID_STEPS steps.
    if rows >= _MIN_GRID_STEPS * _SUBLANE:
        steps_cap = max(_SUBLANE, (rows // _MIN_GRID_STEPS) // _SUBLANE * _SUBLANE)
        tr = min(tr, steps_cap)
    return min(tr, rows)


def latent_z_forward(z: jax.Array, *, force_kernel: bool = False) -> jax.Array:
    """Pallas equivalent of LatentZ.forward(): returns the stored latent.

    Default path returns `z` as-is for small latents (the forward pass is an
    identity).  `force_kernel=True` (or a large latent) runs a lane-dense
    tiled Pallas copy that materializes a fresh buffer.
    """
    z = jnp.asarray(z)
    orig_shape = z.shape
    dtype = z.dtype
    itemsize = jnp.dtype(dtype).itemsize
    n = int(np.prod(orig_shape)) if z.ndim else 1
    nbytes = n * itemsize

    if n == 0:
        return z
    if not force_kernel and nbytes < _BYPASS_BYTES:
        # Identity forward; don't pay kernel dispatch for tiny latents.
        return z

    shape2 = _pick_lane_dense_shape(n)
    if shape2 is None:
        # Element count not a multiple of 128: use one full-array block if it
        # comfortably fits VMEM (legal at any width when block == full array).
        if 4 * nbytes <= _VMEM_LIVE_BUDGET_BYTES:
            shape2 = (1, n)
        else:
            # TODO(synk): no lane-dense tiling for large non-128-multiple
            # element counts; fall back to the no-copy identity.
            return z
    rows, cols = shape2
    z2 = z.reshape(rows, cols)

    tile_rows = _tile_rows_for(rows, cols, itemsize)
    grid = (pl.cdiv(rows, tile_rows),)

    out2 = pl.pallas_call(
        _copy_kernel,
        out_shape=jax.ShapeDtypeStruct((rows, cols), dtype),
        grid=grid,
        in_specs=[pl.BlockSpec((tile_rows, cols), lambda i: (i, 0))],
        out_specs=pl.BlockSpec((tile_rows, cols), lambda i: (i, 0)),
        compiler_params=pltpu.CompilerParams(
            dimension_semantics=("parallel",),
            vmem_limit_bytes=_VMEM_LIMIT_BYTES,
        ),
        cost_estimate=pl.CostEstimate(
            flops=0,
            transcendentals=0,
            bytes_accessed=2 * rows * cols * itemsize,
        ),
    )(z2)
    return out2.reshape(orig_shape)


class LatentZ:
    """Minimal JAX-side mirror of the PyTorch module's parameter handling."""

    def __init__(self, init_val: jax.Array):
        self.z = jnp.asarray(init_val)

    def forward(self) -> jax.Array:
        # forward(): return self.z (identity; Pallas only for large latents).
        return latent_z_forward(self.z)

    def reinit(self, init_val: jax.Array):
        self.z = jnp.asarray(init_val)


if __name__ == "__main__":
    # Deterministic "parameter" init (synthetic, no checkpoint load).
    key = jax.random.PRNGKey(0)
    B, NZ = 2, 128  # small batch, latent dim
    init_val = jax.random.normal(key, (B, NZ), dtype=jnp.float32)
    init_np = np.asarray(init_val)

    module = LatentZ(init_val)

    # 1) Default forward(): identity fast path (no kernel for tiny z).
    out = module.forward()
    jax.block_until_ready(out)
    assert out.shape == (B, NZ)
    assert out.dtype == jnp.float32
    assert np.array_equal(np.asarray(out), init_np)

    # 2) Exercise the Pallas copy kernel explicitly on the same small latent
    #    (single full lane-dense block, grid=(1,)).
    out_k = latent_z_forward(module.z, force_kernel=True)
    jax.block_until_ready(out_k)
    assert np.array_equal(np.asarray(out_k), init_np)

    # 3) reinit() path (mirrors the module API).
    key2 = jax.random.PRNGKey(1)
    init2 = jax.random.normal(key2, (B, NZ), dtype=jnp.float32)
    module.reinit(init2)
    out2 = module.forward()
    jax.block_until_ready(out2)
    assert np.array_equal(np.asarray(out2), np.asarray(init2))

    # 4) (B, NZ, 1, 1)-style latent: flattened lane-dense to (1, 512) before
    #    the kernel (fixes the old cols=1 lane-sparse layout).
    key3 = jax.random.PRNGKey(2)
    z4 = jax.random.normal(key3, (2, 256, 1, 1), dtype=jnp.float32)
    out4 = latent_z_forward(z4, force_kernel=True)
    jax.block_until_ready(out4)
    assert out4.shape == (2, 256, 1, 1)
    assert np.array_equal(np.asarray(out4), np.asarray(z4))

    # 5) A modest 2 MiB latent takes the kernel path without forcing
    #    (above the bypass threshold) and stays lane-dense.
    key4 = jax.random.PRNGKey(3)
    z_big = jax.random.normal(key4, (1024, 512), dtype=jnp.float32)
    out_big = latent_z_forward(z_big)
    jax.block_until_ready(out_big)
    assert out_big.shape == (1024, 512)
    assert np.array_equal(np.asarray(out_big), np.asarray(z_big))

    print("KERNEL_OK")
</pallas_src>

<mosaic_0001>
module attributes {stable_mosaic.version = 11 : i64} {
  func.func @_copy_kernel(%arg0: i32, %arg1: memref<1x256xf32, #tpu.memory_space<vmem>>, %arg2: memref<1x256xf32, #tpu.memory_space<vmem>>) attributes {dimension_semantics = [#tpu.dimension_semantics<parallel>], iteration_bounds = array<i64: 1>, scalar_prefetch = 0 : i64, scratch_operands = 0 : i64, tpu.core_type = #tpu.core_type<tc>, window_params = [{transform_indices = @transform_0, window_bounds = array<i64: 1, 256>}, {transform_indices = @transform_1, window_bounds = array<i64: 1, 256>}]} {
    %c0 = arith.constant 0 : index
    %c0_0 = arith.constant 0 : index
    %0 = vector.load %arg1[%c0, %c0_0] : memref<1x256xf32, #tpu.memory_space<vmem>>, vector<1x256xf32>
    %c0_1 = arith.constant 0 : index
    %c0_2 = arith.constant 0 : index
    %1 = vector.load %arg2[%c0_1, %c0_2] : memref<1x256xf32, #tpu.memory_space<vmem>>, vector<1x256xf32>
    tpu.vector_store %arg2[%c0_1, %c0_2], %0 {strides = array<i32>} : memref<1x256xf32, #tpu.memory_space<vmem>>, vector<1x256xf32>,
    return
  }
  func.func @transform_0(%arg0: i32) -> (i32, i32) {
    %c0_i32 = arith.constant 0 : i32
    %c0_i32_0 = arith.constant 0 : i32
    return %arg0, %c0_i32 : i32, i32
  }
  func.func @transform_1(%arg0: i32) -> (i32, i32) {
    %c0_i32 = arith.constant 0 : i32
    %c0_i32_0 = arith.constant 0 : i32
    return %arg0, %c0_i32 : i32, i32
  }
}

</mosaic_0001>

<llo_original>
// kernel: tpu_custom_call.1
$region0: #{tpu_custom_call.1}
  #allocation0 [shape = 'u32[]', space=smem, size = 0x4, offset = 0x4, fixed_abs, tag = 'smem constant byte address 0x4 - core index']
  #allocation1 [shape = 'u32[144,128]{1,0:T(1,128)}', space=vmem, size = 0x12000, scoped, tag = 'internal scratch']
  %s0 = inlined_call_operand.hbm [shape: f32[1,256], index: 0, kind: input, shape index: {}]
  %s1 = inlined_call_operand.hbm [shape: f32[1,256], index: 1, kind: output, shape index: {}]
  %s2 = sld [smem:[#allocation0]]
  $region18: #{tpu_custom_call.1} parent=0
    _
  %s4 = ssub.s32 1, %s2
  %s5 = scalar_select 0, %s4, %s2
  $region1: #{tpu_custom_call.1} parent=0
    #allocation2 [shape = 'u8[1024]{0}', space=vmem, size = 0x400, scoped, tag = 'input window, operand 0, single buffered']
    #allocation3 [shape = 's32[1]{0}', space=sflag, size = 0x4, scoped, tag = 'scoped memory for tpu_custom_call.1']
    #allocation4 [shape = 's32[1]{0}', space=sflag, size = 0x4, scoped, tag = 'scoped memory for tpu_custom_call.1']
    #allocation5 [shape = 'u8[1024]{0}', space=vmem, size = 0x400, scoped, tag = 'output window, operand 0, single buffered']
    %6 = vsyncpa [#allocation3], 0
    %7 = vsyncpa [#allocation4], 0
    // Predicated region
    $region2: #{tpu_custom_call.1} parent=1 // pred_check
      _
    $region3: #{tpu_custom_call.1} parent=1 // pred_check_branch
      %9 = sbr.rel (0) target = $region5
    $region4: #{tpu_custom_call.1} parent=1 // pred_region
      %s11 = ssub.s32 32, 32
      %12 = vsyncadd [#allocation3], %s11
      %s14 = sshll.u32 [#allocation2], 4
      %s15 = int_to_ptr.vmem [resolvable:$true] %s14
      %17 = dma.hbm_to_vmem [thread:$0]  %s0, 32, %s15, [#allocation3]
    $region5: #{tpu_custom_call.1} parent=1 // pred_fallthru
      _
    // Predicated region
    $region6: #{tpu_custom_call.1} parent=1 // pred_check
      _
    $region7: #{tpu_custom_call.1} parent=1 // pred_check_branch
      %19 = sbr.rel (0) target = $region9
    $region8: #{tpu_custom_call.1} parent=1 // pred_region
      %20 = dma.done [#allocation3], 32
    $region9: #{tpu_custom_call.1} parent=1 // pred_fallthru
      _
    %v21 = vld [vmem:[#allocation2] sm:$0x3]
    %v22 = vlaneseq
    %vm23 = vcmp.ge.s32.totalorder %v22, 0
    %vm24 = vcmp.lt.s32.totalorder %v22, 256
    %vm25 = vmand %vm23, %vm24
    %26 = vst.msk [vmem:[#allocation5] sm:$0x3] %vm25, %v21
    // Predicated region
    $region10: #{tpu_custom_call.1} parent=1 // pred_check
      _
    $region11: #{tpu_custom_call.1} parent=1 // pred_check_branch
      %28 = sbr.rel (0) target = $region13
    $region12: #{tpu_custom_call.1} parent=1 // pred_region
      %s30 = ssub.s32 32, 32
      %31 = vsyncadd [#allocation4], %s30
      %s33 = sshll.u32 [#allocation5], 4
      %s34 = int_to_ptr.vmem [resolvable:$true] %s33
      %36 = dma.vmem_to_hbm [thread:$0]  %s34, 32, %s1, [#allocation4]
    $region13: #{tpu_custom_call.1} parent=1 // pred_fallthru
      _
    // Predicated region
    $region14: #{tpu_custom_call.1} parent=1 // pred_check
      _
    $region15: #{tpu_custom_call.1} parent=1 // pred_check_branch
      %38 = sbr.rel (0) target = $region17
    $region16: #{tpu_custom_call.1} parent=1 // pred_region
      %39 = dma.done [#allocation4], 32
    $region17: #{tpu_custom_call.1} parent=1 // pred_fallthru
      _
    %40 = vsyncpa [#allocation3], 1
    %41 = vsyncpa [#allocation4], 1

</llo_original>
